<compile_context>
chip_gen: v6e
topology: v6e:2x2x1
jax: 0.10.0
libtpu: 0.0.40
codegen_flags: <defaults>
</compile_context>

<pallas_src>
import jax
import jax.numpy as jnp
from jax.experimental import pallas as pl
from jax.experimental.pallas import tpu as pltpu

_LANE = 128
_SUBLANE = 8


def _round_up(x, m):
    return ((x + m - 1) // m) * m


def _make_kernel(n_classes: int, tile_rows: int):
    is_pow2 = (n_classes & (n_classes - 1)) == 0
    # Map the top 24 uniform bits -> [0, n_classes) for the general case.
    scale = float(n_classes) / float(1 << 24)

    def kernel(seed_ref, out_ref):
        tr, lanes = out_ref.shape  # static block shape
        row0 = pl.program_id(0) * tile_rows
        rows_i = jax.lax.broadcasted_iota(jnp.int32, (tr, lanes), 0)
        lane_i = jax.lax.broadcasted_iota(jnp.int32, (tr, lanes), 1)
        gidx = (row0 + rows_i) * lanes + lane_i  # global element index

        # splitmix32-style stateless hash of (seed, global index): pure VPU
        # integer math, deterministic and decorrelated across blocks.
        x = gidx.astype(jnp.uint32) + seed_ref[0].astype(jnp.uint32) * jnp.uint32(0x9E3779B9)
        x = (x ^ (x >> jnp.uint32(16))) * jnp.uint32(0x7FEB352D)
        x = (x ^ (x >> jnp.uint32(15))) * jnp.uint32(0x846CA68B)
        x = x ^ (x >> jnp.uint32(16))

        if is_pow2:
            out_ref[...] = (x & jnp.uint32(n_classes - 1)).astype(jnp.int32)
        else:
            u24 = (x >> jnp.uint32(8)).astype(jnp.int32)            # [0, 2^24)
            idx = (u24.astype(jnp.float32) * jnp.float32(scale)).astype(jnp.int32)
            out_ref[...] = jnp.minimum(idx, jnp.int32(n_classes - 1))

    return kernel


def random_prediction_probe_pallas(x, n_classes, seed=0, max_tile_rows=4096):
    """Pallas equivalent of RandomPredictionProbe.forward(x).

    Returns an int32 vector of shape (x.shape[0],) with values in
    [0, n_classes), generated on-device.
    """
    n_classes = int(n_classes)
    assert 0 < n_classes <= (1 << 24), "n_classes must be in (0, 2^24]"
    n = int(x.shape[0])

    # Lay the N outputs out as a lane-dense (rows, 128) slab; pad rows only to
    # the sublane multiple.
    rows = max(1, pl.cdiv(n, _LANE))
    rows_total = _round_up(rows, _SUBLANE)

    # Large blocks to amortize grid-step overhead, but keep >=2 blocks when
    # possible so v7x's two TensorCores split the parallel axis.
    half = _round_up(pl.cdiv(rows_total, 2), _SUBLANE)
    tile_rows = max(_SUBLANE, min(_round_up(max_tile_rows, _SUBLANE), half))
    grid = (pl.cdiv(rows_total, tile_rows),)

    seed_arr = jnp.asarray([seed], dtype=jnp.int32)

    out2d = pl.pallas_call(
        _make_kernel(n_classes, tile_rows),
        out_shape=jax.ShapeDtypeStruct((rows_total, _LANE), jnp.int32),
        grid=grid,
        in_specs=[pl.BlockSpec(memory_space=pltpu.MemorySpace.SMEM)],
        out_specs=pl.BlockSpec((tile_rows, _LANE), lambda i: (i, 0)),
        compiler_params=pltpu.CompilerParams(
            dimension_semantics=("parallel",),
        ),
        cost_estimate=pl.CostEstimate(
            flops=2 * rows_total * _LANE,
            transcendentals=0,
            bytes_accessed=rows_total * _LANE * 4,
        ),
    )(seed_arr)

    flat = out2d.reshape(-1)
    if flat.shape[0] == n:
        return flat
    return flat[:n]


if __name__ == "__main__":
    key = jax.random.PRNGKey(0)

    # x: (batch=8, features=32). Only x.shape[0] matters for the forward.
    x = jax.random.normal(key, (8, 32), jnp.float32)
    n_classes = 10

    preds = random_prediction_probe_pallas(x, n_classes, seed=0)
    preds = jax.block_until_ready(preds)

    assert preds.shape == (x.shape[0],)
    assert preds.dtype == jnp.int32
    assert bool(jnp.all((preds >= 0) & (preds < n_classes)))

    # Determinism for a fixed seed.
    preds2 = jax.block_until_ready(random_prediction_probe_pallas(x, n_classes, seed=0))
    assert bool(jnp.all(preds == preds2))

    # Ragged batch (exercises padding / slicing path) and non-pow2 classes.
    x2 = jax.random.normal(key, (300, 16), jnp.float32)
    preds3 = jax.block_until_ready(random_prediction_probe_pallas(x2, 1000, seed=7))
    assert preds3.shape == (300,)
    assert preds3.dtype == jnp.int32
    assert bool(jnp.all((preds3 >= 0) & (preds3 < 1000)))

    # Power-of-two classes take the single-mask fast path.
    preds4 = jax.block_until_ready(random_prediction_probe_pallas(x2, 16, seed=3))
    assert bool(jnp.all((preds4 >= 0) & (preds4 < 16)))

    print("KERNEL_OK")
</pallas_src>

<mosaic_0001>
module attributes {stable_mosaic.version = 11 : i64} {
  func.func @kernel(%arg0: i32, %arg1: memref<1xi32, #tpu.memory_space<smem>>, %arg2: memref<8x128xi32, #tpu.memory_space<vmem>>) attributes {dimension_semantics = [#tpu.dimension_semantics<parallel>], iteration_bounds = array<i64: 1>, scalar_prefetch = 0 : i64, scratch_operands = 0 : i64, tpu.core_type = #tpu.core_type<tc>, window_params = [{transform_indices = @transform_0, window_bounds = array<i64: 1>}, {transform_indices = @transform_1, window_bounds = array<i64: 8, 128>}]} {
    %c8_i32 = arith.constant 8 : i32
    %0 = arith.muli %arg0, %c8_i32 : i32
    %1 = tpu.iota {dimensions = array<i32: 0>} : vector<8x128xi32>
    %2 = tpu.iota {dimensions = array<i32: 1>} : vector<8x128xi32>
    %3 = vector.broadcast %0 : i32 to vector<8x128xi32>
    %4 = arith.addi %3, %1 : vector<8x128xi32>
    %c128_i32 = arith.constant 128 : i32
    %5 = vector.broadcast %c128_i32 : i32 to vector<8x128xi32>
    %6 = arith.muli %4, %5 : vector<8x128xi32>
    %7 = arith.addi %6, %2 : vector<8x128xi32>
    %c0 = arith.constant 0 : index
    %8 = memref.load %arg1[%c0] : memref<1xi32, #tpu.memory_space<smem>>
    %c-1640531527_i32 = arith.constant -1640531527 : i32
    %9 = arith.muli %8, %c-1640531527_i32 : i32
    %10 = vector.broadcast %9 : i32 to vector<8x128xi32>
    %11 = arith.addi %7, %10 : vector<8x128xi32>
    %c16_i32 = arith.constant 16 : i32
    %12 = vector.broadcast %c16_i32 : i32 to vector<8x128xi32>
    %13 = arith.shrui %11, %12 : vector<8x128xi32>
    %14 = arith.xori %11, %13 : vector<8x128xi32>
    %c2146121005_i32 = arith.constant 2146121005 : i32
    %15 = vector.broadcast %c2146121005_i32 : i32 to vector<8x128xi32>
    %16 = arith.muli %14, %15 : vector<8x128xi32>
    %c15_i32 = arith.constant 15 : i32
    %17 = vector.broadcast %c15_i32 : i32 to vector<8x128xi32>
    %18 = arith.shrui %16, %17 : vector<8x128xi32>
    %19 = arith.xori %16, %18 : vector<8x128xi32>
    %c-2073254261_i32 = arith.constant -2073254261 : i32
    %20 = vector.broadcast %c-2073254261_i32 : i32 to vector<8x128xi32>
    %21 = arith.muli %19, %20 : vector<8x128xi32>
    %c16_i32_0 = arith.constant 16 : i32
    %22 = vector.broadcast %c16_i32_0 : i32 to vector<8x128xi32>
    %23 = arith.shrui %21, %22 : vector<8x128xi32>
    %24 = arith.xori %21, %23 : vector<8x128xi32>
    %c8_i32_1 = arith.constant 8 : i32
    %25 = vector.broadcast %c8_i32_1 : i32 to vector<8x128xi32>
    %26 = arith.shrui %24, %25 : vector<8x128xi32>
    %27 = arith.sitofp %26 : vector<8x128xi32> to vector<8x128xf32>
    %cst = arith.constant 5.96046448E-7 : f32
    %28 = vector.broadcast %cst : f32 to vector<8x128xf32>
    %29 = arith.mulf %27, %28 : vector<8x128xf32>
    %30 = arith.fptosi %29 : vector<8x128xf32> to vector<8x128xi32>
    %c9_i32 = arith.constant 9 : i32
    %31 = vector.broadcast %c9_i32 : i32 to vector<8x128xi32>
    %32 = arith.minsi %30, %31 : vector<8x128xi32>
    %c0_2 = arith.constant 0 : index
    %c0_3 = arith.constant 0 : index
    %33 = vector.load %arg2[%c0_2, %c0_3] : memref<8x128xi32, #tpu.memory_space<vmem>>, vector<8x128xi32>
    tpu.vector_store %arg2[%c0_2, %c0_3], %32 {strides = array<i32>} : memref<8x128xi32, #tpu.memory_space<vmem>>, vector<8x128xi32>,
    return
  }
  func.func @transform_0(%arg0: i32) -> i32 {
    %c0_i32 = arith.constant 0 : i32
    %c0_i32_0 = arith.constant 0 : i32
    return %c0_i32 : i32
  }
  func.func @transform_1(%arg0: i32) -> (i32, i32) {
    %c0_i32 = arith.constant 0 : i32
    %c0_i32_0 = arith.constant 0 : i32
    return %arg0, %c0_i32 : i32, i32
  }
}

</mosaic_0001>

<llo_original>
// kernel: tpu_custom_call.1
$region0: #{tpu_custom_call.1}
  #allocation0 [shape = 'u32[]', space=smem, size = 0x4, offset = 0x4, fixed_abs, tag = 'smem constant byte address 0x4 - core index']
  #allocation1 [shape = 'u32[144,128]{1,0:T(1,128)}', space=vmem, size = 0x12000, scoped, tag = 'internal scratch']
  #allocation2 [shape = 's32[1]{0:T(128)S(6)}', space=smem, size = 0x200, scoped, tag = 'scoped memory for tpu_custom_call.1']
  %s0 = inlined_call_operand.<no memory space> [shape: s32[1], index: 0, kind: input, shape index: {}]
  %s1 = inlined_call_operand.hbm [shape: s32[8,128], index: 1, kind: output, shape index: {}]
  %s2 = sld [smem:[#allocation0]]
  $region14: #{tpu_custom_call.1} parent=0
    _
  %s4 = ssub.s32 1, %s2
  %s5 = scalar_select 0, %s4, %s2
  %6 = sst [smem:[#allocation2]] %s0
  $region1: #{tpu_custom_call.1} parent=0
    #allocation3 [shape = 'u8[4096]{0}', space=vmem, size = 0x1000, scoped, tag = 'output window, operand 0, single buffered']
    #allocation4 [shape = 's32[1]{0}', space=sflag, size = 0x4, scoped, tag = 'scoped memory for tpu_custom_call.1']
    %7 = vsyncpa [#allocation4], 0
    // Predicated region
    $region2: #{tpu_custom_call.1} parent=1 // pred_check
      _
    $region3: #{tpu_custom_call.1} parent=1 // pred_check_branch
      %9 = sbr.rel (0) target = $region5
    $region4: #{tpu_custom_call.1} parent=1 // pred_region
      _
    $region5: #{tpu_custom_call.1} parent=1 // pred_fallthru
      _
    %s10 = smul.u32 0, 8
    %v11 = vlaneseq
    %v12 = vshrl.u32 %v11, 7
    %v13 = vlaneseq
    %v14 = vand.u32 %v13, 127
    %v15 = vstv %s10
    %v16 = vadd.s32 %v15, %v12
    %v17 = vmul.u32 %v16, 128
    %v18 = vadd.s32 %v17, %v14
    %s19 = sld [smem:[#allocation2]]
    %s20 = smul.u32 %s19, 2654435769
    %v21 = vstv %s20
    %v22 = vadd.s32 %v18, %v21
    %v23 = vshrl.u32 %v22, 16
    %v24 = vxor.u32 %v22, %v23
    %v25 = vmul.u32 %v24, 2146121005
    %v26 = vshrl.u32 %v25, 15
    %v27 = vxor.u32 %v25, %v26
    %v28 = vmul.u32 %v27, 2221713035
    %v29 = vshrl.u32 %v28, 16
    %v30 = vxor.u32 %v28, %v29
    %v31 = vshrl.u32 %v30, 8
    %v32 = vcvt.s32.f32 %v31
    %v33 = vmul.f32 %v32, 5.9604645e-07
    %v34 = vcvt.f32.s32.to.zero.pseudo %v33
    %vm35 = vcmp.lt.s32.totalorder %v34, 9
    %v36 = vsel %vm35, %v34, 9
    %37 = vst [vmem:[#allocation3] sm:$0xff] %v36
    // Predicated region
    $region6: #{tpu_custom_call.1} parent=1 // pred_check
      _
    $region7: #{tpu_custom_call.1} parent=1 // pred_check_branch
      %39 = sbr.rel (0) target = $region9
    $region8: #{tpu_custom_call.1} parent=1 // pred_region
      %s41 = ssub.s32 128, 128
      %42 = vsyncadd [#allocation4], %s41
      %s44 = sshll.u32 [#allocation3], 4
      %s45 = int_to_ptr.vmem [resolvable:$true] %s44
      %47 = dma.vmem_to_hbm [thread:$0]  %s45, 128, %s1, [#allocation4]
    $region9: #{tpu_custom_call.1} parent=1 // pred_fallthru
      _
    // Predicated region
    $region10: #{tpu_custom_call.1} parent=1 // pred_check
      _
    $region11: #{tpu_custom_call.1} parent=1 // pred_check_branch
      %49 = sbr.rel (0) target = $region13
    $region12: #{tpu_custom_call.1} parent=1 // pred_region
      %50 = dma.done [#allocation4], 128
    $region13: #{tpu_custom_call.1} parent=1 // pred_fallthru
      _
    %51 = vsyncpa [#allocation4], 1

</llo_original>
